<compile_context>
chip_gen: v5e
topology: v5e:2x2
jax: 0.10.0
libtpu: 0.0.40
codegen_flags: <defaults>
</compile_context>

<pallas_src>
import functools

import numpy as np
import jax
import jax.numpy as jnp
from jax import lax
from jax.experimental import pallas as pl
from jax.experimental.pallas import tpu as pltpu


# ----------------------------------------------------------------------------
# Host-side 0/1 selection matrices (tiny; stay resident in VMEM).
# ----------------------------------------------------------------------------
def _np_stretch(n_src, rep):
    """(n_src, n_src*rep) 0/1 matrix: out[a, b] = 1 iff b // rep == a."""
    cols = np.arange(n_src * rep)
    out = np.zeros((n_src, n_src * rep), np.float32)
    out[cols // rep, cols] = 1.0
    return out


def _np_member_sum(g, m, k):
    """(g*m*k, g*k) 0/1 matrix mapping lane (g, m, k) -> lane (g, k)."""
    rows = np.arange(g * m * k)
    out = np.zeros((g * m * k, g * k), np.float32)
    out[rows, (rows // (m * k)) * k + (rows % k)] = 1.0
    return out


# ----------------------------------------------------------------------------
# Kernel
# ----------------------------------------------------------------------------
def _brier_kernel(w_ref, p_ref, y_ref, sw_ref, ss_ref, sy_ref, kp_ref, acc_ref,
                  *, n_groups, n_members, n_classes, rows_total, tile_r):
    # w_ref : (tile_r, G*M)     weights, G instances per lane-row
    # p_ref : (tile_r, G*M*K)   predictions, natural HBM order
    # y_ref : (tile_r, G)       int32 labels
    # sw_ref: (G*M, G*M*K) f32  stretch weights into p's lane layout
    # ss_ref: (G*M*K, G*K) f32  sum over members, compact to (g, k) lanes
    # sy_ref: (G, G*K)    bf16  stretch labels into (g, k) lanes (exact: ints)
    # kp_ref: (1, G*K)    f32   per-lane class index pattern
    # acc_ref: (1, G*K)   f32   resident per-partition accumulator
    c = pl.program_id(0)
    i = pl.program_id(1)

    @pl.when(i == 0)
    def _init():
        acc_ref[...] = jnp.zeros_like(acc_ref)

    w = w_ref[...].astype(jnp.float32)
    p = p_ref[...].astype(jnp.float32)

    # 1) Replicate each weight across its K class lanes (pure-copy 0/1 matmul
    #    on the otherwise idle MXU), multiply with p on the VPU.
    if n_classes > 1:
        w_rep = jnp.dot(w, sw_ref[...], preferred_element_type=jnp.float32)
    else:
        w_rep = w
    wp = w_rep * p                                           # (tile_r, G*M*K)

    # 2) Sum over ensemble members and compact to (group, class) lanes.
    if n_members > 1:
        p_bar = jnp.dot(wp, ss_ref[...], preferred_element_type=jnp.float32)
    else:
        p_bar = wp                                           # already (tile_r, G*K)

    # 3) One-hot labels in the same (group, class) lane layout.  Labels are
    #    small integers, so the bf16 stretch matmul is exact and cheap.
    if n_groups > 1:
        y_b = y_ref[...].astype(jnp.float32).astype(jnp.bfloat16)
        y_dup = jnp.dot(y_b, sy_ref[...], preferred_element_type=jnp.float32)
    else:
        y_dup = jnp.broadcast_to(y_ref[...].astype(jnp.float32),
                                 (p_bar.shape[0], n_classes))
    onehot = (y_dup == kp_ref[...]).astype(jnp.float32)

    d = p_bar - onehot
    sq = d * d                                               # (tile_r, G*K)

    # 4) Accumulate.  Only the global last block can be row-partial, so the
    #    validity mask (iota + compare + where) is gated there; interior
    #    blocks skip the extra VPU ops.
    is_last = jnp.logical_and(c == pl.num_programs(0) - 1,
                              i == pl.num_programs(1) - 1)

    @pl.when(is_last)
    def _tail():
        base = (c * pl.num_programs(1) + i) * tile_r
        rows = base + lax.broadcasted_iota(jnp.int32, sq.shape, 0)
        acc_ref[...] += jnp.sum(jnp.where(rows < rows_total, sq, 0.0),
                                axis=0, keepdims=True)

    @pl.when(jnp.logical_not(is_last))
    def _body():
        acc_ref[...] += jnp.sum(sq, axis=0, keepdims=True)


# ----------------------------------------------------------------------------
# Wrapper
# ----------------------------------------------------------------------------
def brier_loss_pallas(p_preds, weights_l, y_labels, *, tile_rows=None):
    """Brier score of the weighted ensemble prediction.

    p_preds: (N, M, K) probabilities, weights_l: (N, M), y_labels: (N,) ints.
    Returns a scalar: mean_n sum_k (p_bar[n,k] - onehot[n,k])^2.
    """
    N, M, K = (int(s) for s in p_preds.shape)

    def _keep(x):  # bf16 passthrough (halves HBM traffic); everything else f32
        return x if x.dtype in (jnp.float32, jnp.bfloat16) else x.astype(jnp.float32)

    p = _keep(jnp.asarray(p_preds))
    w = _keep(jnp.asarray(weights_l))
    y = jnp.asarray(y_labels).astype(jnp.int32)

    # Pack G instances per lane-row (largest divisor of N with G*M*K <= 128).
    g_max = max(1, 128 // max(1, M * K))
    G = 1
    for cand in range(min(g_max, N), 0, -1):
        if N % cand == 0:
            G = cand
            break
    # TODO(synk): awkward N (e.g. prime) falls back to G=1 (lane-sparse but
    # correct); a small separate tail kernel would keep G large in that case.
    R = N // G
    GM, GMK, GK = G * M, G * M * K, G * K

    # Free, contiguous row-major reshapes: zero extra HBM passes.
    p2 = p.reshape(R, GMK)
    w2 = w.reshape(R, GM)
    y2 = y.reshape(R, G)

    sel_w = _np_stretch(GM, K)                              # (GM, GMK)
    sel_sum = _np_member_sum(G, M, K)                       # (GMK, GK)
    sel_y = jnp.asarray(_np_stretch(G, K), dtype=jnp.bfloat16)  # (G, GK)
    k_pat = np.tile(np.arange(K, dtype=np.float32), G).reshape(1, GK)

    # ---- tile sizing: ~1.5-3 MB useful HBM per step, inputs <= ~16 MiB VMEM
    # (double-buffered, lane dim padded to 128), under a 32 MiB scoped limit
    # that is legal on v5e / v6e / v7x.
    _cdiv = lambda a, b: -(-a // b)
    _pad128 = lambda v: _cdiv(v, 128) * 128
    isz = max(p2.dtype.itemsize, w2.dtype.itemsize)
    padded_row = (_pad128(GMK) + _pad128(GM)) * isz + _pad128(G) * 4
    useful_row = (GMK + GM) * isz + G * 4
    if tile_rows is None:
        tile_rows = min((16 << 20) // (2 * padded_row),
                        (3 << 20) // useful_row)
    tile_rows = max(16, int(tile_rows))

    if tile_rows >= R:
        tile_r, num_par, nb = R, 1, 1                       # single full block
    else:
        tile_r = max(16, (tile_rows // 16) * 16)            # sublane rule (f32 & bf16)
        # Keep the block count even so the leading "parallel" axis can split
        # the reduction across the two TensorCores of a v7x chip (1-TC chips
        # just run it as an outer loop).
        t = tile_r
        while t >= 16 and _cdiv(R, t) % 2 != 0:
            t -= 16
        if t >= 16:
            tile_r = t
        total = _cdiv(R, tile_r)
        if total % 2 == 0:
            num_par, nb = 2, total // 2
        else:
            num_par, nb = 1, total
    # TODO(synk): on v7x hardware verify ("parallel", ...) shards the leading
    # grid axis across both TensorCores; otherwise switch to pltpu.CORE_PARALLEL.

    row_map = lambda c, i: (c * nb + i, 0)
    whole = lambda c, i: (0, 0)

    kernel = functools.partial(
        _brier_kernel, n_groups=G, n_members=M, n_classes=K,
        rows_total=R, tile_r=tile_r)

    partial_sums = pl.pallas_call(
        kernel,
        out_shape=jax.ShapeDtypeStruct((num_par, 1, GK), jnp.float32),
        grid=(num_par, nb),
        in_specs=[
            pl.BlockSpec((tile_r, GM), row_map),
            pl.BlockSpec((tile_r, GMK), row_map),
            pl.BlockSpec((tile_r, G), row_map),
            pl.BlockSpec((GM, GMK), whole),
            pl.BlockSpec((GMK, GK), whole),
            pl.BlockSpec((G, GK), whole),
            pl.BlockSpec((1, GK), whole),
        ],
        # Accumulator block depends only on the parallel index -> stays
        # resident in VMEM across the inner (reduction) grid axis.
        out_specs=pl.BlockSpec((None, 1, GK), lambda c, i: (c, 0, 0)),
        compiler_params=pltpu.CompilerParams(
            dimension_semantics=("parallel", "arbitrary"),
            vmem_limit_bytes=32 * 1024 * 1024,
        ),
    )(w2, p2, y2, sel_w, sel_sum, sel_y, k_pat)

    return jnp.sum(partial_sums) / float(N)


def _brier_ref(p_preds, weights_l, y_labels):
    # Pure-JAX reference mirroring the PyTorch module.
    p_bar = jnp.sum(weights_l[:, :, None].astype(jnp.float32) *
                    p_preds.astype(jnp.float32), axis=1)           # (N, K)
    y_onehot = jnp.eye(p_bar.shape[1], dtype=jnp.float32)[y_labels]
    return jnp.mean(jnp.sum((p_bar - y_onehot) ** 2, axis=1))


if __name__ == "__main__":
    key = jax.random.PRNGKey(0)
    k1, k2, k3, k4, k5, k6 = jax.random.split(key, 6)

    # Case 1: small shapes -> single full block (G=8 instances per lane-row).
    N1, M1, K1 = 64, 4, 3
    p_preds1 = jax.nn.softmax(jax.random.normal(k1, (N1, M1, K1)), axis=-1)
    weights1 = jax.nn.softmax(jax.random.normal(k2, (N1, M1)), axis=-1)
    y1 = jax.random.randint(k3, (N1,), 0, K1)

    loss1 = brier_loss_pallas(p_preds1, weights1, y1)
    jax.block_until_ready(loss1)
    ref1 = _brier_ref(p_preds1, weights1, y1)
    assert jnp.allclose(loss1, ref1, rtol=1e-5, atol=1e-6), (loss1, ref1)

    # Case 2: forced small tile -> gridded/pipelined path, 2-way parallel
    # block split, masked partial last tile, G=10 instances per lane-row.
    N2, M2, K2 = 1000, 4, 3
    p_preds2 = jax.nn.softmax(jax.random.normal(k4, (N2, M2, K2)), axis=-1)
    weights2 = jax.nn.softmax(jax.random.normal(k5, (N2, M2)), axis=-1)
    y2 = jax.random.randint(k6, (N2,), 0, K2)

    loss2 = brier_loss_pallas(p_preds2, weights2, y2, tile_rows=32)
    jax.block_until_ready(loss2)
    ref2 = _brier_ref(p_preds2, weights2, y2)
    assert jnp.allclose(loss2, ref2, rtol=1e-5, atol=1e-6), (loss2, ref2)

    print("KERNEL_OK")
</pallas_src>

<mosaic_0001>
module attributes {stable_mosaic.version = 11 : i64} {
  func.func @_brier_kernel(%arg0: i32, %arg1: i32, %arg2: memref<8x32xf32, #tpu.memory_space<vmem>>, %arg3: memref<8x96xf32, #tpu.memory_space<vmem>>, %arg4: memref<8x8xi32, #tpu.memory_space<vmem>>, %arg5: memref<32x96xf32, #tpu.memory_space<vmem>>, %arg6: memref<96x24xf32, #tpu.memory_space<vmem>>, %arg7: memref<8x24xbf16, #tpu.memory_space<vmem>>, %arg8: memref<1x24xf32, #tpu.memory_space<vmem>>, %arg9: memref<1x1x24xf32, #tpu.memory_space<vmem>>) attributes {dimension_semantics = [#tpu.dimension_semantics<parallel>, #tpu.dimension_semantics<arbitrary>], iteration_bounds = array<i64: 1, 1>, scalar_prefetch = 0 : i64, scratch_operands = 0 : i64, tpu.core_type = #tpu.core_type<tc>, window_params = [{transform_indices = @transform_0, window_bounds = array<i64: 8, 32>}, {transform_indices = @transform_1, window_bounds = array<i64: 8, 96>}, {transform_indices = @transform_2, window_bounds = array<i64: 8, 8>}, {pipeline_mode = #tpu.pipeline_mode<synchronous>, transform_indices = @transform_3, window_bounds = array<i64: 32, 96>}, {pipeline_mode = #tpu.pipeline_mode<synchronous>, transform_indices = @transform_4, window_bounds = array<i64: 96, 24>}, {pipeline_mode = #tpu.pipeline_mode<synchronous>, transform_indices = @transform_5, window_bounds = array<i64: 8, 24>}, {pipeline_mode = #tpu.pipeline_mode<synchronous>, transform_indices = @transform_6, window_bounds = array<i64: 1, 24>}, {transform_indices = @transform_7, window_bounds = array<i64: 1, 1, 24>}]} {
    %c0_i32 = arith.constant 0 : i32
    %0 = arith.cmpi eq, %arg1, %c0_i32 : i32
    %1 = arith.extui %0 : i1 to i32
    %c0_i32_0 = arith.constant 0 : i32
    %2 = arith.cmpi ne, %1, %c0_i32_0 : i32
    scf.if %2 {
      %cst_20 = arith.constant 0.000000e+00 : f32
      %30 = vector.broadcast %cst_20 : f32 to vector<1x24xf32>
      %c0_21 = arith.constant 0 : index
      %c0_22 = arith.constant 0 : index
      %c0_23 = arith.constant 0 : index
      %31 = vector.load %arg9[%c0_21, %c0_22, %c0_23] : memref<1x1x24xf32, #tpu.memory_space<vmem>>, vector<1x1x24xf32>
      %32 = vector.shape_cast %31 : vector<1x1x24xf32> to vector<1x24xf32>
      %33 = vector.shape_cast %30 : vector<1x24xf32> to vector<1x1x24xf32>
      tpu.vector_store %arg9[%c0_21, %c0_22, %c0_23], %33 {strides = array<i32>} : memref<1x1x24xf32, #tpu.memory_space<vmem>>, vector<1x1x24xf32>,
    } else {
    }
    %c0 = arith.constant 0 : index
    %c0_1 = arith.constant 0 : index
    %3 = vector.load %arg2[%c0, %c0_1] : memref<8x32xf32, #tpu.memory_space<vmem>>, vector<8x32xf32>
    %c0_2 = arith.constant 0 : index
    %c0_3 = arith.constant 0 : index
    %4 = vector.load %arg3[%c0_2, %c0_3] : memref<8x96xf32, #tpu.memory_space<vmem>>, vector<8x96xf32>
    %c0_4 = arith.constant 0 : index
    %c0_5 = arith.constant 0 : index
    %5 = vector.load %arg5[%c0_4, %c0_5] : memref<32x96xf32, #tpu.memory_space<vmem>>, vector<32x96xf32>
    %cst = arith.constant dense<0.000000e+00> : vector<8x96xf32>
    %6 = tpu.matmul %3, %5, %cst {dimension_numbers = #tpu.dot_dimension_numbers<[1], [0], [0], [1], [0, 0, 1, 1], [], []>} : vector<8x32xf32>, vector<32x96xf32>, vector<8x96xf32> -> vector<8x96xf32>
    %7 = arith.mulf %6, %4 : vector<8x96xf32>
    %c0_6 = arith.constant 0 : index
    %c0_7 = arith.constant 0 : index
    %8 = vector.load %arg6[%c0_6, %c0_7] : memref<96x24xf32, #tpu.memory_space<vmem>>, vector<96x24xf32>
    %cst_8 = arith.constant dense<0.000000e+00> : vector<8x24xf32>
    %9 = tpu.matmul %7, %8, %cst_8 {dimension_numbers = #tpu.dot_dimension_numbers<[1], [0], [0], [1], [0, 0, 1, 1], [], []>} : vector<8x96xf32>, vector<96x24xf32>, vector<8x24xf32> -> vector<8x24xf32>
    %c0_9 = arith.constant 0 : index
    %c0_10 = arith.constant 0 : index
    %10 = vector.load %arg4[%c0_9, %c0_10] : memref<8x8xi32, #tpu.memory_space<vmem>>, vector<8x8xi32>
    %11 = arith.sitofp %10 : vector<8x8xi32> to vector<8x8xf32>
    %12 = arith.truncf %11 : vector<8x8xf32> to vector<8x8xbf16>
    %c0_11 = arith.constant 0 : index
    %c0_12 = arith.constant 0 : index
    %13 = vector.load %arg7[%c0_11, %c0_12] : memref<8x24xbf16, #tpu.memory_space<vmem>>, vector<8x24xbf16>
    %cst_13 = arith.constant dense<0.000000e+00> : vector<8x24xf32>
    %14 = tpu.matmul %12, %13, %cst_13 {dimension_numbers = #tpu.dot_dimension_numbers<[1], [0], [0], [1], [0, 0, 1, 1], [], []>} : vector<8x8xbf16>, vector<8x24xbf16>, vector<8x24xf32> -> vector<8x24xf32>
    %c0_14 = arith.constant 0 : index
    %c0_15 = arith.constant 0 : index
    %15 = vector.load %arg8[%c0_14, %c0_15] : memref<1x24xf32, #tpu.memory_space<vmem>>, vector<1x24xf32>
    %16 = vector.broadcast %15 : vector<1x24xf32> to vector<8x24xf32>
    %17 = arith.cmpf oeq, %14, %16 : vector<8x24xf32>
    %18 = arith.extui %17 : vector<8x24xi1> to vector<8x24xi32>
    %19 = arith.sitofp %18 : vector<8x24xi32> to vector<8x24xf32>
    %20 = arith.subf %9, %19 : vector<8x24xf32>
    %21 = arith.mulf %20, %20 : vector<8x24xf32>
    %c0_i32_16 = arith.constant 0 : i32
    %22 = arith.cmpi eq, %arg0, %c0_i32_16 : i32
    %c0_i32_17 = arith.constant 0 : i32
    %23 = arith.cmpi eq, %arg1, %c0_i32_17 : i32
    %24 = arith.andi %22, %23 : i1
    %25 = arith.extui %24 : i1 to i32
    %c0_i32_18 = arith.constant 0 : i32
    %26 = arith.cmpi ne, %25, %c0_i32_18 : i32
    scf.if %26 {
      %c1_i32 = arith.constant 1 : i32
      %30 = arith.muli %arg0, %c1_i32 : i32
      %31 = arith.addi %30, %arg1 : i32
      %c8_i32 = arith.constant 8 : i32
      %32 = arith.muli %31, %c8_i32 : i32
      %33 = tpu.iota {dimensions = array<i32: 0>} : vector<8x24xi32>
      %34 = vector.broadcast %32 : i32 to vector<8x24xi32>
      %35 = arith.addi %34, %33 : vector<8x24xi32>
      %c0_20 = arith.constant 0 : index
      %c0_21 = arith.constant 0 : index
      %c0_22 = arith.constant 0 : index
      %36 = vector.load %arg9[%c0_20, %c0_21, %c0_22] : memref<1x1x24xf32, #tpu.memory_space<vmem>>, vector<1x1x24xf32>
      %37 = vector.shape_cast %36 : vector<1x1x24xf32> to vector<1x24xf32>
      %c8_i32_23 = arith.constant 8 : i32
      %38 = vector.broadcast %c8_i32_23 : i32 to vector<8x24xi32>
      %39 = arith.cmpi slt, %35, %38 : vector<8x24xi32>
      %cst_24 = arith.constant 0.000000e+00 : f32
      %40 = vector.broadcast %cst_24 : f32 to vector<8x24xf32>
      %41 = arith.select %39, %21, %40 : vector<8x24xi1>, vector<8x24xf32>
      %cst_25 = arith.constant dense<0.000000e+00> : vector<24xf32>
      %42 = vector.multi_reduction <add>, %41, %cst_25 [0] : vector<8x24xf32> to vector<24xf32>
      %43 = vector.shape_cast %42 : vector<24xf32> to vector<1x24xf32>
      %44 = arith.addf %37, %43 : vector<1x24xf32>
      %c0_26 = arith.constant 0 : index
      %c0_27 = arith.constant 0 : index
      %c0_28 = arith.constant 0 : index
      %45 = vector.load %arg9[%c0_26, %c0_27, %c0_28] : memref<1x1x24xf32, #tpu.memory_space<vmem>>, vector<1x1x24xf32>
      %46 = vector.shape_cast %45 : vector<1x1x24xf32> to vector<1x24xf32>
      %47 = vector.shape_cast %44 : vector<1x24xf32> to vector<1x1x24xf32>
      tpu.vector_store %arg9[%c0_26, %c0_27, %c0_28], %47 {strides = array<i32>} : memref<1x1x24xf32, #tpu.memory_space<vmem>>, vector<1x1x24xf32>,
    } else {
    }
    %true = arith.constant true
    %27 = arith.xori %24, %true : i1
    %28 = arith.extui %27 : i1 to i32
    %c0_i32_19 = arith.constant 0 : i32
    %29 = arith.cmpi ne, %28, %c0_i32_19 : i32
    scf.if %29 {
      %c0_20 = arith.constant 0 : index
      %c0_21 = arith.constant 0 : index
      %c0_22 = arith.constant 0 : index
      %30 = vector.load %arg9[%c0_20, %c0_21, %c0_22] : memref<1x1x24xf32, #tpu.memory_space<vmem>>, vector<1x1x24xf32>
      %31 = vector.shape_cast %30 : vector<1x1x24xf32> to vector<1x24xf32>
      %cst_23 = arith.constant dense<0.000000e+00> : vector<24xf32>
      %32 = vector.multi_reduction <add>, %21, %cst_23 [0] : vector<8x24xf32> to vector<24xf32>
      %33 = vector.shape_cast %32 : vector<24xf32> to vector<1x24xf32>
      %34 = arith.addf %31, %33 : vector<1x24xf32>
      %c0_24 = arith.constant 0 : index
      %c0_25 = arith.constant 0 : index
      %c0_26 = arith.constant 0 : index
      %35 = vector.load %arg9[%c0_24, %c0_25, %c0_26] : memref<1x1x24xf32, #tpu.memory_space<vmem>>, vector<1x1x24xf32>
      %36 = vector.shape_cast %35 : vector<1x1x24xf32> to vector<1x24xf32>
      %37 = vector.shape_cast %34 : vector<1x24xf32> to vector<1x1x24xf32>
      tpu.vector_store %arg9[%c0_24, %c0_25, %c0_26], %37 {strides = array<i32>} : memref<1x1x24xf32, #tpu.memory_space<vmem>>, vector<1x1x24xf32>,
    } else {
    }
    return
  }
  func.func @transform_0(%arg0: i32, %arg1: i32) -> (i32, i32) {
    %c1_i32 = arith.constant 1 : i32
    %0 = arith.muli %arg0, %c1_i32 : i32
    %1 = arith.addi %0, %arg1 : i32
    %c0_i32 = arith.constant 0 : i32
    %c0_i32_0 = arith.constant 0 : i32
    return %1, %c0_i32 : i32, i32
  }
  func.func @transform_1(%arg0: i32, %arg1: i32) -> (i32, i32) {
    %c1_i32 = arith.constant 1 : i32
    %0 = arith.muli %arg0, %c1_i32 : i32
    %1 = arith.addi %0, %arg1 : i32
    %c0_i32 = arith.constant 0 : i32
    %c0_i32_0 = arith.constant 0 : i32
    return %1, %c0_i32 : i32, i32
  }
  func.func @transform_2(%arg0: i32, %arg1: i32) -> (i32, i32) {
    %c1_i32 = arith.constant 1 : i32
    %0 = arith.muli %arg0, %c1_i32 : i32
    %1 = arith.addi %0, %arg1 : i32
    %c0_i32 = arith.constant 0 : i32
    %c0_i32_0 = arith.constant 0 : i32
    return %1, %c0_i32 : i32, i32
  }
  func.func @transform_3(%arg0: i32, %arg1: i32) -> (i32, i32) {
    %c0_i32 = arith.constant 0 : i32
    %c0_i32_0 = arith.constant 0 : i32
    %c0_i32_1 = arith.constant 0 : i32
    return %c0_i32, %c0_i32_0 : i32, i32
  }
  func.func @transform_4(%arg0: i32, %arg1: i32) -> (i32, i32) {
    %c0_i32 = arith.constant 0 : i32
    %c0_i32_0 = arith.constant 0 : i32
    %c0_i32_1 = arith.constant 0 : i32
    return %c0_i32, %c0_i32_0 : i32, i32
  }
  func.func @transform_5(%arg0: i32, %arg1: i32) -> (i32, i32) {
    %c0_i32 = arith.constant 0 : i32
    %c0_i32_0 = arith.constant 0 : i32
    %c0_i32_1 = arith.constant 0 : i32
    return %c0_i32, %c0_i32_0 : i32, i32
  }
  func.func @transform_6(%arg0: i32, %arg1: i32) -> (i32, i32) {
    %c0_i32 = arith.constant 0 : i32
    %c0_i32_0 = arith.constant 0 : i32
    %c0_i32_1 = arith.constant 0 : i32
    return %c0_i32, %c0_i32_0 : i32, i32
  }
  func.func @transform_7(%arg0: i32, %arg1: i32) -> (i32, i32, i32) {
    %c0_i32 = arith.constant 0 : i32
    %c0_i32_0 = arith.constant 0 : i32
    %c0_i32_1 = arith.constant 0 : i32
    return %arg0, %c0_i32, %c0_i32_0 : i32, i32, i32
  }
}

</mosaic_0001>

<llo_original>
// kernel: tpu_custom_call.1
$region0: #{tpu_custom_call.1}
  #allocation0 [shape = 'u32[]', space=smem, size = 0x4, offset = 0x4, fixed_abs, tag = 'smem constant byte address 0x4 - core index']
  #allocation1 [shape = 'u32[72,128]{1,0:T(1,128)}', space=vmem, size = 0x9000, scoped, tag = 'internal scratch']
  %s0 = inlined_call_operand.vmem [shape: f32[8,32], index: 0, kind: input, shape index: {}]
  %s1 = inlined_call_operand.vmem [shape: f32[8,96], index: 1, kind: input, shape index: {}]
  %s2 = inlined_call_operand.vmem [shape: s32[8,8], index: 2, kind: input, shape index: {}]
  %s3 = inlined_call_operand.vmem [shape: f32[32,96], index: 3, kind: input, shape index: {}]
  %s4 = inlined_call_operand.vmem [shape: f32[96,24], index: 4, kind: input, shape index: {}]
  %s5 = inlined_call_operand.vmem [shape: bf16[8,24], index: 5, kind: input, shape index: {}]
  %s6 = inlined_call_operand.vmem [shape: f32[1,24], index: 6, kind: input, shape index: {}]
  %s7 = inlined_call_operand.hbm [shape: f32[1,1,24], index: 7, kind: output, shape index: {}]
  %s8 = sld [smem:[#allocation0]]
  $region50: #{tpu_custom_call.1} parent=0
    _
  %s10 = ssub.s32 1, %s8
  %s11 = scalar_select 0, %s10, %s8
  $region1: #{tpu_custom_call.1} parent=0
    #allocation2 [shape = 'u8[512]{0}', space=vmem, size = 0x400, scoped, tag = 'output window, operand 0, single buffered']
    #allocation3 [shape = 's32[1]{0}', space=sflag, size = 0x4, scoped, tag = 'scoped memory for tpu_custom_call.1']
    %12 = vsyncpa [#allocation3], 0
    // Predicated region
    $region2: #{tpu_custom_call.1} parent=1 // pred_check
      _
    $region3: #{tpu_custom_call.1} parent=1 // pred_check_branch
      %14 = sbr.rel (0) target = $region5
    $region4: #{tpu_custom_call.1} parent=1 // pred_region
      %s15 = sadd.s32 0, 0
      %p16 = scmp.lt.s32.totalorder %s15, 0
      %s17 = scalar_select %p16, %s15, 0
      %s18 = smul.addr %s17, 8
      %s19 = scalar_lea.vmem %s0, %s18
      %s20 = sadd.s32 0, 0
    $region5: #{tpu_custom_call.1} parent=1 // pred_fallthru
      _
    // Predicated region
    $region6: #{tpu_custom_call.1} parent=1 // pred_check
      _
    $region7: #{tpu_custom_call.1} parent=1 // pred_check_branch
      %22 = sbr.rel (0) target = $region9
    $region8: #{tpu_custom_call.1} parent=1 // pred_region
      %s23 = sadd.s32 0, 0
      %p24 = scmp.lt.s32.totalorder %s23, 0
      %s25 = scalar_select %p24, %s23, 0
      %s26 = smul.addr %s25, 8
      %s27 = scalar_lea.vmem %s1, %s26
      %s28 = sadd.s32 0, 0
    $region9: #{tpu_custom_call.1} parent=1 // pred_fallthru
      _
    // Predicated region
    $region10: #{tpu_custom_call.1} parent=1 // pred_check
      _
    $region11: #{tpu_custom_call.1} parent=1 // pred_check_branch
      %30 = sbr.rel (0) target = $region13
    $region12: #{tpu_custom_call.1} parent=1 // pred_region
      %s31 = sadd.s32 0, 0
      %p32 = scmp.lt.s32.totalorder %s31, 0
      %s33 = scalar_select %p32, %s31, 0
      %s34 = smul.addr %s33, 8
      %s35 = scalar_lea.vmem %s2, %s34
      %s36 = sadd.s32 0, 0
    $region13: #{tpu_custom_call.1} parent=1 // pred_fallthru
      _
    // Predicated region
    $region14: #{tpu_custom_call.1} parent=1 // pred_check
      _
    $region15: #{tpu_custom_call.1} parent=1 // pred_check_branch
      %38 = sbr.rel (0) target = $region17
    $region16: #{tpu_custom_call.1} parent=1 // pred_region
      _
    $region17: #{tpu_custom_call.1} parent=1 // pred_fallthru
      _
    // Predicated region
    $region18: #{tpu_custom_call.1} parent=1 // pred_check
      _
    $region19: #{tpu_custom_call.1} parent=1 // pred_check_branch
      %40 = sbr.rel (0) target = $region21
    $region20: #{tpu_custom_call.1} parent=1 // pred_region
      _
    $region21: #{tpu_custom_call.1} parent=1 // pred_fallthru
      _
    // Predicated region
    $region22: #{tpu_custom_call.1} parent=1 // pred_check
      _
    $region23: #{tpu_custom_call.1} parent=1 // pred_check_branch
      %42 = sbr.rel (0) target = $region25
    $region24: #{tpu_custom_call.1} parent=1 // pred_region
      _
    $region25: #{tpu_custom_call.1} parent=1 // pred_fallthru
      _
    // Predicated region
    $region26: #{tpu_custom_call.1} parent=1 // pred_check
      _
    $region27: #{tpu_custom_call.1} parent=1 // pred_check_branch
      %44 = sbr.rel (0) target = $region29
    $region28: #{tpu_custom_call.1} parent=1 // pred_region
      _
    $region29: #{tpu_custom_call.1} parent=1 // pred_fallthru
      _
    %s45 = sadd.s32 0, 0
    %p46 = scmp.lt.s32.totalorder %s45, 0
    %s47 = scalar_select %p46, %s45, 0
    %s48 = smul.addr %s47, 8
    %s49 = scalar_lea.vmem %s0, %s48
    %s50 = sadd.s32 0, 0
    %p51 = scmp.lt.s32.totalorder %s50, 0
    %s52 = scalar_select %p51, %s50, 0
    %s53 = smul.addr %s52, 8
    %s54 = scalar_lea.vmem %s1, %s53
    %s55 = sadd.s32 0, 0
    %p56 = scmp.lt.s32.totalorder %s55, 0
    %s57 = scalar_select %p56, %s55, 0
    %s58 = smul.addr %s57, 8
    %s59 = scalar_lea.vmem %s2, %s58
    %s60 = sadd.s32 0, 0
    %p61 = scmp.lt.s32.totalorder %s60, 0
    %s62 = scalar_select %p61, %s60, 0
    %s63 = smul.addr %s62, 8
    %s64 = scalar_lea.vmem %s0, %s63
    %s65 = sadd.s32 0, 0
    %s66 = sadd.s32 0, 0
    %p67 = scmp.lt.s32.totalorder %s66, 0
    %s68 = scalar_select %p67, %s66, 0
    %s69 = smul.addr %s68, 8
    %s70 = scalar_lea.vmem %s1, %s69
    %s71 = sadd.s32 0, 0
    %s72 = sadd.s32 0, 0
    %p73 = scmp.lt.s32.totalorder %s72, 0
    %s74 = scalar_select %p73, %s72, 0
    %s75 = smul.addr %s74, 8
    %s76 = scalar_lea.vmem %s2, %s75
    %s77 = sadd.s32 0, 0
    %p79 = scmp.eq.s32.totalorder 0, 0
    // Predicated region
    $region30: #{tpu_custom_call.1} parent=1 // pred_check
      %p80 = pneg %p79
    $region31: #{tpu_custom_call.1} parent=1 // pred_check_branch
      %82 = sbr.rel (%p80) target = $region33
    $region32: #{tpu_custom_call.1} parent=1 // pred_region
      %vm83 = vcmask 188416
      %84 = vst.msk [vmem:[#allocation2] sm:$0x1] %vm83, 0.0
    $region33: #{tpu_custom_call.1} parent=1 // pred_fallthru
      _
    %v85 = vld [vmem:[%s64] sm:$0xff]
    %v86 = vld [vmem:[%s70] sm:$0xff]
    %v87 = vld [vmem:[%s3] sm:$0xff]
    %v88 = vld [vmem:[%s3 + $0x8] sm:$0xff]
    %v89 = vld [vmem:[%s3 + $0x10] sm:$0xff]
    %v90 = vld [vmem:[%s3 + $0x18] sm:$0xff]
    %vm91 = vcmask 261120
    %v93 = vsel %vm91, %v85, 0
    %95 = vmatpush.msra.mxu0 0.0
    %96 = vmatpush.msra.mxu0 0.0
    %97 = vmatpush.msra.mxu0 0.0
    %98 = vmatpush.msra.mxu0 0.0
    %99 = vmatpush.msra.mxu0 0.0
    %100 = vmatpush.msra.mxu0 0.0
    %101 = vmatpush.msra.mxu0 0.0
    %102 = vmatpush.msra.mxu0 0.0
    %103 = vmatpush.msra.mxu0 0.0
    %104 = vmatpush.msra.mxu0 0.0
    %105 = vmatpush.msra.mxu0 0.0
    %106 = vmatpush.msra.mxu0 0.0
    %107 = vmatpush.msra.mxu0 %v90
    %108 = vmatpush.msra.mxu0 %v89
    %109 = vmatpush.msra.mxu0 %v88
    %110 = vmatpush.msra.mxu0 %v87
    %111 = vmatmul.f32.gmra.mxu0 %v93
    %v112 = vpop.f32.mrf.mxu0
    %v113 = vadd.f32 0.0, %v112
    %114 = vdwg.mxu0
    %v115 = vmul.f32 %v113, %v86
    %v116 = vld [vmem:[%s4] sm:$0xff]
    %v117 = vld [vmem:[%s4 + $0x8] sm:$0xff]
    %v118 = vld [vmem:[%s4 + $0x10] sm:$0xff]
    %v119 = vld [vmem:[%s4 + $0x18] sm:$0xff]
    %v120 = vld [vmem:[%s4 + $0x20] sm:$0xff]
    %v121 = vld [vmem:[%s4 + $0x28] sm:$0xff]
    %v122 = vld [vmem:[%s4 + $0x30] sm:$0xff]
    %v123 = vld [vmem:[%s4 + $0x38] sm:$0xff]
    %v124 = vld [vmem:[%s4 + $0x40] sm:$0xff]
    %v125 = vld [vmem:[%s4 + $0x48] sm:$0xff]
    %v126 = vld [vmem:[%s4 + $0x50] sm:$0xff]
    %v127 = vld [vmem:[%s4 + $0x58] sm:$0xff]
    %vm128 = vcmask 785408
    %v130 = vsel %vm128, %v115, 0
    %132 = vmatpush.msra.mxu0 0.0
    %133 = vmatpush.msra.mxu0 0.0
    %134 = vmatpush.msra.mxu0 0.0
    %135 = vmatpush.msra.mxu0 0.0
    %136 = vmatpush.msra.mxu0 %v127
    %137 = vmatpush.msra.mxu0 %v126
    %138 = vmatpush.msra.mxu0 %v125
    %139 = vmatpush.msra.mxu0 %v124
    %140 = vmatpush.msra.mxu0 %v123
    %141 = vmatpush.msra.mxu0 %v122
    %142 = vmatpush.msra.mxu0 %v121
    %143 = vmatpush.msra.mxu0 %v120
    %144 = vmatpush.msra.mxu0 %v119
    %145 = vmatpush.msra.mxu0 %v118
    %146 = vmatpush.msra.mxu0 %v117
    %147 = vmatpush.msra.mxu0 %v116
    %148 = vmatmul.f32.gmra.mxu0 %v130
    %v149 = vpop.f32.mrf.mxu0
    %v150 = vadd.f32 0.0, %v149
    %151 = vdwg.mxu0
    %v152 = vld [vmem:[%s76] sm:$0xff]
    %v153 = vcvt.s32.f32 %v152
    %v154 = vpack.c.bf16 %v153, %v153
    %v155 = vld [vmem:[%s5] sm:$0xf]
    %vm156 = vcmask 64512
    %v158 = vsel %vm156, %v154, 0
    %vm160 = vcmask 1043456
    %v162 = vsel %vm160, %v155, 0
    %164 = vmatpush.bf16.msra.mxu0 0
    %165 = vmatpush.bf16.msra.mxu0 0
    %166 = vmatpush.bf16.msra.mxu0 0
    %167 = vmatpush.bf16.msra.mxu0 0
    %168 = vmatpush.bf16.msra.mxu0 0
    %169 = vmatpush.bf16.msra.mxu0 0
    %170 = vmatpush.bf16.msra.mxu0 0
    %171 = vmatpush.bf16.msra.mxu0 %v162
    %172 = vmatmul.bf16.gmra.mxu0 %v158
    %v173 = vpop.f32.mrf.mxu0
    %v174 = vadd.f32 0.0, %v173
    %v175 = vpop.f32.mrf.mxu0
    %176 = vdwg.mxu0
    %v177 = vld [vmem:[%s6] sm:$0x1]
    %v179 = vperm.slane %v177, 0
    %vm181 = vcmp.eq.f32.partialorder %v174, %v179
    %v182 = vsel %vm181, 1, 0
    %v183 = vcvt.s32.f32 %v182
    %v184 = vsub.f32 %v150, %v183
    %v185 = vmul.f32 %v184, %v184
    %p186 = scmp.eq.s32.totalorder 0, 0
    %p187 = pnand %p186, %p79
    %p188 = pneg %p187
    // Predicated region
    $region34: #{tpu_custom_call.1} parent=1 // pred_check
      _
    $region35: #{tpu_custom_call.1} parent=1 // pred_check_branch
      %190 = sbr.rel (%p187) target = $region37
    $region36: #{tpu_custom_call.1} parent=1 // pred_region
      %s191 = sadd.s32 0, 0
      %s192 = smul.u32 %s191, 8
      %v193 = vlaneseq
      %v194 = vshrl.u32 %v193, 7
      %v195 = vstv %s192
      %v196 = vadd.s32 %v195, %v194
      %v197 = vld [vmem:[#allocation2] sm:$0x1]
      %vm198 = vcmp.lt.s32.totalorder %v196, 8
      %v199 = vsel %vm198, %v185, 0.0
      %vm200 = vcmask 195584
      %v201 = vsel %vm200, %v199, 0.0
      %v202 = vrot.slane %v201, 4
      %v203 = vadd.f32 %v201, %v202
      %v204 = vrot.slane %v203, 2
      %v205 = vadd.f32 %v203, %v204
      %v206 = vrot.slane %v205, 1
      %v207 = vadd.f32 %v205, %v206
      %v208 = vadd.f32 %v197, %v207
      %vm209 = vcmask 188416
      %210 = vst.msk [vmem:[#allocation2] sm:$0x1] %vm209, %v208
    $region37: #{tpu_custom_call.1} parent=1 // pred_fallthru
      _
    %p211 = pneg %p188
    // Predicated region
    $region38: #{tpu_custom_call.1} parent=1 // pred_check
      _
    $region39: #{tpu_custom_call.1} parent=1 // pred_check_branch
      %213 = sbr.rel (%p188) target = $region41
    $region40: #{tpu_custom_call.1} parent=1 // pred_region
      %v214 = vld [vmem:[#allocation2] sm:$0x1]
      %vm215 = vcmask 195584
      %v216 = vsel %vm215, %v185, 0.0
      %v217 = vrot.slane %v216, 4
      %v218 = vadd.f32 %v216, %v217
      %v219 = vrot.slane %v218, 2
      %v220 = vadd.f32 %v218, %v219
      %v221 = vrot.slane %v220, 1
      %v222 = vadd.f32 %v220, %v221
      %v223 = vadd.f32 %v214, %v222
      %vm224 = vcmask 188416
      %225 = vst.msk [vmem:[#allocation2] sm:$0x1] %vm224, %v223
    $region41: #{tpu_custom_call.1} parent=1 // pred_fallthru
      _
    // Predicated region
    $region42: #{tpu_custom_call.1} parent=1 // pred_check
      _
    $region43: #{tpu_custom_call.1} parent=1 // pred_check_branch
      %227 = sbr.rel (0) target = $region45
    $region44: #{tpu_custom_call.1} parent=1 // pred_region
      %229 = vsyncadd [#allocation3], 0
      %s231 = sshll.u32 [#allocation2], 4
      %s232 = int_to_ptr.vmem [resolvable:$true] %s231
      %s233 = sshll.u32 %s7, 4
      %s234 = int_to_ptr.hbm [resolvable:$true] %s233
      %236 = dma.vmem_to_hbm [thread:$0]  %s232, 16, %s234, [#allocation3]
    $region45: #{tpu_custom_call.1} parent=1 // pred_fallthru
      _
    // Predicated region
    $region46: #{tpu_custom_call.1} parent=1 // pred_check
      _
    $region47: #{tpu_custom_call.1} parent=1 // pred_check_branch
      %238 = sbr.rel (0) target = $region49
    $region48: #{tpu_custom_call.1} parent=1 // pred_region
      %240 = dma.done [#allocation3], 16
    $region49: #{tpu_custom_call.1} parent=1 // pred_fallthru
      _
    %241 = vsyncpa [#allocation3], 1

</llo_original>
